<compile_context>
chip_gen: v6e
topology: v6e:2x2x1
jax: 0.10.0
libtpu: 0.0.40
codegen_flags: <defaults>
</compile_context>

<pallas_src>
import functools

import jax
import jax.numpy as jnp
from jax import lax
from jax.experimental import pallas as pl
from jax.experimental.pallas import tpu as pltpu


_LANE_GROUP = 1024          # accumulator lane width (multiple of 128)
_MAX_GROUPS = 64            # lane-groups per grid step -> 2 MiB tiles (any dtype)
_FAST_PATH_MAX = 128 * 1024  # whole-array single-block path up to this size


def _sublanes_for(dtype) -> int:
    """Native sublane packing: f32 -> 8, bf16/f16 -> 16, 8-bit -> 32."""
    bits = jnp.dtype(dtype).itemsize * 8
    if bits >= 32:
        return 8
    if bits == 16:
        return 16
    return 32


def _loss_single_kernel(logp_ref, out_ref, *, inv_batch: float):
    """Fast path: whole (1, batch) array resident in VMEM; one reduce."""
    x = logp_ref[...].astype(jnp.float32)            # native-dtype DMA, f32 math
    total = jnp.sum(x, axis=-1, keepdims=True)       # (1, 1)
    out_ref[...] = -(total * inv_batch)


def _loss_tiled_kernel(logp_ref, out_ref, acc_ref, *, inv_batch: float):
    """Streaming path: grid (core, step); tile = (groups, sublanes, lanes)."""
    i = pl.program_id(1)

    @pl.when(i == 0)
    def _init():
        acc_ref[...] = jnp.zeros_like(acc_ref)

    n_groups = logp_ref.shape[0]

    # Carry the per-tile partial sum in vregs (8-16 vregs) — no accumulator
    # VMEM read-modify-write inside the loop, pure vld + vadd per group.
    def body(g, carry):
        return carry + logp_ref[g].astype(jnp.float32)

    partial = lax.fori_loop(0, n_groups, body,
                            jnp.zeros(acc_ref.shape, jnp.float32))
    acc_ref[...] += partial           # one small (sublanes, 1024) update / step

    @pl.when(i == pl.num_programs(1) - 1)
    def _finalize():
        # Single cross-lane + cross-sublane (XLU) reduce over the tiny
        # accumulator, scaled and negated; each core writes its own block.
        row = jnp.sum(acc_ref[...], axis=-1, keepdims=True)   # (S, 1)
        tot = jnp.sum(row, axis=0, keepdims=True)              # (1, 1)
        out_ref[...] = jnp.broadcast_to(-(tot * inv_batch), out_ref.shape)


def labeler_loss(logp: jax.Array) -> jax.Array:
    """Pallas equivalent of Labeler.loss's reduction: -log_prob(x, y).mean(0).

    logp: [batch] per-sequence log-probabilities (any float dtype; the
          accumulation is always performed in float32 inside the kernel).
    Returns: scalar float32 loss.
    """
    if logp.ndim != 1:
        raise ValueError("labeler_loss expects 1-D per-sequence log-probs "
                         "[batch]; see TODO(synk) about trailing dims.")
    batch = logp.shape[0]
    if batch == 0:
        raise ValueError("labeler_loss requires batch >= 1")

    inv_batch = 1.0 / batch
    itemsize = jnp.dtype(logp.dtype).itemsize

    # ---------------- fast path: one full-extent block, no grid ----------------
    if batch <= _FAST_PATH_MAX:
        out = pl.pallas_call(
            functools.partial(_loss_single_kernel, inv_batch=inv_batch),
            out_shape=jax.ShapeDtypeStruct((1, 1), jnp.float32),
            in_specs=[pl.BlockSpec(memory_space=pltpu.MemorySpace.VMEM)],
            out_specs=pl.BlockSpec(memory_space=pltpu.MemorySpace.VMEM),
            compiler_params=pltpu.CompilerParams(allow_input_fusion=[0]),
            cost_estimate=pl.CostEstimate(flops=batch, transcendentals=0,
                                          bytes_accessed=batch * itemsize + 4),
        )(logp.reshape(1, batch))
        return out.reshape(())

    # ---------------- multi-tile streaming path (huge batches) -----------------
    sublanes = _sublanes_for(logp.dtype)
    groups = max(1, min(_MAX_GROUPS,
                        pl.cdiv(batch, 2 * sublanes * _LANE_GROUP)))
    chunk = groups * sublanes * _LANE_GROUP          # elements per grid step
    n_per_core = pl.cdiv(batch, 2 * chunk)           # steps per "core" axis slot
    padded = 2 * n_per_core * chunk

    # Zero-pad + reshape stay in the wrapper, but allow_input_fusion=[0] lets
    # XLA fuse them into the pallas input read instead of writing a second
    # padded copy of the array to HBM.  Zeros never perturb the sum; division
    # uses the TRUE batch size.  Input is kept in its NATIVE dtype.
    logp3d = jnp.pad(logp, (0, padded - batch)).reshape(
        2 * n_per_core * groups, sublanes, _LANE_GROUP)

    out = pl.pallas_call(
        functools.partial(_loss_tiled_kernel, inv_batch=inv_batch),
        out_shape=jax.ShapeDtypeStruct((2, 8, 128), jnp.float32),
        grid=(2, n_per_core),
        in_specs=[pl.BlockSpec(
            (groups, sublanes, _LANE_GROUP),
            lambda c, i: (c * n_per_core + i, 0, 0))],
        out_specs=pl.BlockSpec((1, 8, 128), lambda c, i: (c, 0, 0)),
        scratch_shapes=[pltpu.VMEM((sublanes, _LANE_GROUP), jnp.float32)],
        compiler_params=pltpu.CompilerParams(
            dimension_semantics=("parallel", "arbitrary"),
            allow_input_fusion=[0]),
        cost_estimate=pl.CostEstimate(
            flops=padded, transcendentals=0,
            bytes_accessed=padded * itemsize + 2 * 8 * 128 * 4),
    )(logp3d)

    # Each core already wrote -(its partial sum)/batch; combine the two.
    return (out[0, 0, 0] + out[1, 0, 0]).reshape(())


if __name__ == "__main__":
    key = jax.random.PRNGKey(0)
    k0, k1, k2, k3 = jax.random.split(key, 4)

    # Case 1: small f32 batch (canonical per-sequence log-probs) -> fast path.
    logp_f32 = -jnp.abs(jax.random.normal(k0, (8,), dtype=jnp.float32)) * 3.0
    loss = labeler_loss(logp_f32)
    jax.block_until_ready(loss)
    ref = -jnp.mean(logp_f32, axis=0)
    assert jnp.allclose(loss, ref, rtol=1e-6, atol=1e-6), (loss, ref)

    # Case 2: bf16, non-multiple-of-8 batch -> fast path, native-dtype DMA.
    logp_bf16 = (-jnp.abs(jax.random.normal(k1, (300,), dtype=jnp.float32)) * 3.0
                 ).astype(jnp.bfloat16)
    loss = labeler_loss(logp_bf16)
    jax.block_until_ready(loss)
    ref = -jnp.mean(logp_bf16.astype(jnp.float32), axis=0)
    assert jnp.allclose(loss, ref, rtol=1e-5, atol=1e-5), (loss, ref)

    # Case 3: large f32 batch -> tiled streaming path, grid (2, n_per_core>1):
    # exercises init / accumulate-across-steps / finalize and the 2-core split.
    logp_big = -jnp.abs(jax.random.normal(k2, (1_300_000,), dtype=jnp.float32))
    loss = labeler_loss(logp_big)
    jax.block_until_ready(loss)
    ref = -jnp.mean(logp_big, axis=0)
    assert jnp.allclose(loss, ref, rtol=2e-4, atol=1e-5), (loss, ref)

    # Case 4: large bf16 batch -> tiled path with native 16-sublane bf16 tiles
    # and a padded ragged tail (review's bf16 multi-chunk correctness concern).
    logp_big_bf16 = (-jnp.abs(jax.random.normal(k3, (200_000,),
                                                dtype=jnp.float32))
                     ).astype(jnp.bfloat16)
    loss = labeler_loss(logp_big_bf16)
    jax.block_until_ready(loss)
    ref = -jnp.mean(logp_big_bf16.astype(jnp.float32), axis=0)
    assert jnp.allclose(loss, ref, rtol=1e-4, atol=1e-5), (loss, ref)

    print("KERNEL_OK")
</pallas_src>

<mosaic_0001>
module attributes {stable_mosaic.version = 11 : i64} {
  func.func @_loss_single_kernel(%arg0: memref<1x8xf32, #tpu.memory_space<vmem>>, %arg1: memref<1x1xf32, #tpu.memory_space<vmem>>) attributes {dimension_semantics = [], scalar_prefetch = 0 : i64, scratch_operands = 0 : i64, tpu.core_type = #tpu.core_type<tc>} {
    %c0 = arith.constant 0 : index
    %c0_0 = arith.constant 0 : index
    %0 = vector.load %arg0[%c0, %c0_0] : memref<1x8xf32, #tpu.memory_space<vmem>>, vector<1x8xf32>
    %cst = arith.constant dense<0.000000e+00> : vector<1xf32>
    %1 = vector.multi_reduction <add>, %0, %cst [1] : vector<1x8xf32> to vector<1xf32>
    %2 = vector.shape_cast %1 : vector<1xf32> to vector<1x1xf32>
    %cst_1 = arith.constant 1.250000e-01 : f32
    %3 = vector.broadcast %cst_1 : f32 to vector<1x1xf32>
    %4 = arith.mulf %2, %3 : vector<1x1xf32>
    %cst_2 = arith.constant 0.000000e+00 : f32
    %5 = vector.broadcast %cst_2 : f32 to vector<1x1xf32>
    %6 = arith.subf %5, %4 : vector<1x1xf32>
    %c0_3 = arith.constant 0 : index
    %c0_4 = arith.constant 0 : index
    %7 = vector.load %arg1[%c0_3, %c0_4] : memref<1x1xf32, #tpu.memory_space<vmem>>, vector<1x1xf32>
    tpu.vector_store %arg1[%c0_3, %c0_4], %6 {strides = array<i32>} : memref<1x1xf32, #tpu.memory_space<vmem>>, vector<1x1xf32>,
    return
  }
}

</mosaic_0001>

<llo_original>
// kernel: tpu_custom_call.1
$region0: #{tpu_custom_call.1}
  #allocation0 [shape = 'u32[]', space=smem, size = 0x4, offset = 0x4, fixed_abs, tag = 'smem constant byte address 0x4 - core index']
  #allocation1 [shape = 'u32[144,128]{1,0:T(1,128)}', space=vmem, size = 0x12000, scoped, tag = 'internal scratch']
  %s0 = inlined_call_operand.hbm [shape: f32[1,8], index: 0, kind: input, shape index: {}]
  %s1 = inlined_call_operand.hbm [shape: f32[1,1], index: 1, kind: output, shape index: {}]
  %s2 = sld [smem:[#allocation0]]
  $region18: #{tpu_custom_call.1} parent=0
    _
  %s4 = ssub.s32 1, %s2
  %s5 = scalar_select 0, %s4, %s2
  $region1: #{tpu_custom_call.1} parent=0
    #allocation2 [shape = 'u8[512]{0}', space=vmem, size = 0x400, scoped, tag = 'input window, operand 0, single buffered']
    #allocation3 [shape = 's32[1]{0}', space=sflag, size = 0x4, scoped, tag = 'scoped memory for tpu_custom_call.1']
    #allocation4 [shape = 's32[1]{0}', space=sflag, size = 0x4, scoped, tag = 'scoped memory for tpu_custom_call.1']
    #allocation5 [shape = 'u8[512]{0}', space=vmem, size = 0x400, scoped, tag = 'output window, operand 0, single buffered']
    %6 = vsyncpa [#allocation3], 0
    %7 = vsyncpa [#allocation4], 0
    // Predicated region
    $region2: #{tpu_custom_call.1} parent=1 // pred_check
      _
    $region3: #{tpu_custom_call.1} parent=1 // pred_check_branch
      %9 = sbr.rel (0) target = $region5
    $region4: #{tpu_custom_call.1} parent=1 // pred_region
      %s11 = ssub.s32 16, 16
      %12 = vsyncadd [#allocation3], %s11
      %s14 = sshll.u32 [#allocation2], 4
      %s15 = int_to_ptr.vmem [resolvable:$true] %s14
      %17 = dma.hbm_to_vmem [thread:$0]  %s0, 16, %s15, [#allocation3]
    $region5: #{tpu_custom_call.1} parent=1 // pred_fallthru
      _
    // Predicated region
    $region6: #{tpu_custom_call.1} parent=1 // pred_check
      _
    $region7: #{tpu_custom_call.1} parent=1 // pred_check_branch
      %19 = sbr.rel (0) target = $region9
    $region8: #{tpu_custom_call.1} parent=1 // pred_region
      %20 = dma.done [#allocation3], 16
    $region9: #{tpu_custom_call.1} parent=1 // pred_fallthru
      _
    %v21 = vld [vmem:[#allocation2] sm:$0x1]
    %vm22 = vcmask 57344
    %v23 = vsel %vm22, %v21, 0.0
    %24 = vadd.xlane.f32.xlu0 %v23
    %v25 = vpop.xlane.xlu0 %24
    %v26 = vmul.f32 %v25, 0.125
    %v27 = vsub.f32 0.0, %v26
    %vm28 = vcmask 0
    %29 = vst.msk [vmem:[#allocation5] sm:$0x1] %vm28, %v27
    // Predicated region
    $region10: #{tpu_custom_call.1} parent=1 // pred_check
      _
    $region11: #{tpu_custom_call.1} parent=1 // pred_check_branch
      %31 = sbr.rel (0) target = $region13
    $region12: #{tpu_custom_call.1} parent=1 // pred_region
      %s33 = ssub.s32 16, 16
      %34 = vsyncadd [#allocation4], %s33
      %s36 = sshll.u32 [#allocation5], 4
      %s37 = int_to_ptr.vmem [resolvable:$true] %s36
      %39 = dma.vmem_to_hbm [thread:$0]  %s37, 16, %s1, [#allocation4]
    $region13: #{tpu_custom_call.1} parent=1 // pred_fallthru
      _
    // Predicated region
    $region14: #{tpu_custom_call.1} parent=1 // pred_check
      _
    $region15: #{tpu_custom_call.1} parent=1 // pred_check_branch
      %41 = sbr.rel (0) target = $region17
    $region16: #{tpu_custom_call.1} parent=1 // pred_region
      %42 = dma.done [#allocation4], 16
    $region17: #{tpu_custom_call.1} parent=1 // pred_fallthru
      _
    %43 = vsyncpa [#allocation3], 1
    %44 = vsyncpa [#allocation4], 1

</llo_original>
